<compile_context>
chip_gen: v5e
topology: v5e:2x2
jax: 0.10.0
libtpu: 0.0.40
codegen_flags: <defaults>
</compile_context>

<pallas_src>
import functools

import jax
import jax.numpy as jnp
from jax.experimental import pallas as pl
from jax.experimental.pallas import tpu as pltpu


def _round_up(x, m):
    return ((x + m - 1) // m) * m


def _ffn_kernel(*refs, num_layers, slope, compute_dtype):
    """One M-tile of tokens through the whole (unrolled) layer stack.

    refs = (x_ref, w_0..w_{L-1}, b_0..b_{L-1}, o_ref)
      x_ref : (tm, Dp_in)   f32 tokens (zero-padded lanes)
      w_l   : (Kp_l, Np_l)  layer weight (compute_dtype, zero-padded)
      b_l   : (1,  Np_l)    layer bias   (f32, zero-padded)
      o_ref : (tm, Dp_out)  f32 output tile
    """
    x_ref = refs[0]
    o_ref = refs[-1]
    w_refs = refs[1:1 + num_layers]
    b_refs = refs[1 + num_layers:1 + 2 * num_layers]

    h = x_ref[...]                                       # f32 running activation
    for l in range(num_layers):                          # unrolled (L is static)
        y = jnp.dot(h.astype(compute_dtype), w_refs[l][...],
                    preferred_element_type=jnp.float32)  # MXU, f32 accumulate
        y = y + b_refs[l][...]                           # f32 bias broadcast
        h = jnp.where(y >= 0.0, y, slope * y)            # leaky_relu after EVERY layer
    o_ref[...] = h.astype(o_ref.dtype)


def _vmem_cap_bytes():
    """Physical VMEM with headroom for Mosaic internal scratch."""
    try:
        cap = int(pltpu.get_tpu_info().vmem_capacity_bytes)
    except Exception:
        cap = 64 << 20                                   # conservative (v7x)
    return max(int(cap * 0.85), 32 << 20)


def positionwise_feed_forward(x, params, leaky_relu_slope=0.1,
                              tm_max=512, compute_dtype=jnp.bfloat16):
    """x: (batch, seq, d_model) -> (batch, seq, d_model), float32 output.

    params: list of (w, b) with w shaped (d_in, d_out). Empty list == identity.
    compute_dtype: dtype fed to the MXU (bf16 default = fast path on
    v5e/v6e/v7x; pass jnp.float32 for exact x.float() semantics).
    """
    if len(params) == 0:                                 # num_dense == 0: identity
        return x

    B, S, D = x.shape
    M = B * S
    L = len(params)
    dims = [(w.shape[0], w.shape[1]) for (w, _) in params]
    d_out = dims[-1][1]

    Dp_in = _round_up(D, 128)
    Dp_out = _round_up(d_out, 128)
    pdims = [(_round_up(din, 128), _round_up(dout, 128)) for (din, dout) in dims]
    max_w = max([Dp_in] + [npad for (_, npad) in pdims])

    wbytes = jnp.dtype(compute_dtype).itemsize
    # Resident weights/biases (Pallas still allocates 2 buffers per input).
    weight_vmem = sum(2 * wbytes * kp * npad + 2 * 4 * npad for (kp, npad) in pdims)

    def act_vmem(tm):
        # x/out tiles (double-buffered) + compiler temps for the widest h.
        return 4 * tm * (2 * Dp_in + 2 * Dp_out + 2 * max_w)

    cap = _vmem_cap_bytes()

    # M tile: large to amortize per-step overhead; multiple of 8 (f32 sublanes).
    tm = min(tm_max, _round_up(M, 8))
    if M > 256:
        # >= 2 tiles so the "parallel" M axis can shard across v7x's 2 TCs.
        tm = min(tm, _round_up((M + 1) // 2, 8))
    while weight_vmem + act_vmem(tm) > cap and tm > 8:
        tm = max(8, tm // 2)
    Mp = _round_up(M, tm)

    # One-time pad + cast of the activations.
    x2 = jnp.zeros((Mp, Dp_in), jnp.float32).at[:M, :D].set(
        x.reshape(M, D).astype(jnp.float32))

    # Per-layer exact-padded weights (compute_dtype) and biases (f32).
    w_padded, b_padded = [], []
    for (w, b), (kp, npad) in zip(params, pdims):
        din, dout = w.shape
        w_padded.append(jnp.zeros((kp, npad), compute_dtype)
                        .at[:din, :dout].set(w.astype(compute_dtype)))
        b_padded.append(jnp.zeros((1, npad), jnp.float32)
                        .at[0, :dout].set(b.astype(jnp.float32)))

    in_specs = [pl.BlockSpec((tm, Dp_in), lambda i: (i, 0))]          # tokens
    in_specs += [pl.BlockSpec((kp, npad), lambda i: (0, 0))            # W_l (resident)
                 for (kp, npad) in pdims]
    in_specs += [pl.BlockSpec((1, npad), lambda i: (0, 0))             # b_l (resident)
                 for (_, npad) in pdims]
    out_spec = pl.BlockSpec((tm, Dp_out), lambda i: (i, 0))

    need = weight_vmem + act_vmem(tm)
    vmem_limit = int(min(max(need + (4 << 20), 32 << 20), cap))

    cost = pl.CostEstimate(
        flops=sum(2 * M * din * dout for (din, dout) in dims),
        transcendentals=0,
        bytes_accessed=int(4 * M * D + 4 * M * d_out
                           + sum(wbytes * kp * npad + 4 * npad
                                 for (kp, npad) in pdims)),
    )

    out = pl.pallas_call(
        functools.partial(_ffn_kernel, num_layers=L,
                          slope=leaky_relu_slope, compute_dtype=compute_dtype),
        out_shape=jax.ShapeDtypeStruct((Mp, Dp_out), jnp.float32),
        grid_spec=pltpu.PrefetchScalarGridSpec(
            num_scalar_prefetch=0,
            grid=(Mp // tm,),
            in_specs=in_specs,
            out_specs=out_spec,
        ),
        compiler_params=pltpu.CompilerParams(
            dimension_semantics=("parallel",),
            vmem_limit_bytes=vmem_limit,
        ),
        cost_estimate=cost,
    )(x2, *w_padded, *b_padded)

    return out[:M, :d_out].reshape(B, S, d_out)


def init_ffn_params(key, d_model, num_dense, d_ff):
    """Deterministic params matching nn.Linear's U(-1/sqrt(fan_in), 1/sqrt(fan_in))."""
    if num_dense == 0:
        return []
    if num_dense == 1:
        dims = [(d_model, d_model)]
    else:
        dims = [(d_model, d_ff)] + [(d_ff, d_ff)] * (num_dense - 2) + [(d_ff, d_model)]
    params = []
    for (din, dout) in dims:
        key, kw, kb = jax.random.split(key, 3)
        bound = 1.0 / jnp.sqrt(jnp.float32(din))
        w = jax.random.uniform(kw, (din, dout), jnp.float32, -bound, bound)
        b = jax.random.uniform(kb, (dout,), jnp.float32, -bound, bound)
        params.append((w, b))
    return params


def _reference(x, params, slope):
    if len(params) == 0:
        return x
    h = x.astype(jnp.float32)
    for (w, b) in params:
        h = h @ w + b
        h = jnp.where(h >= 0, h, slope * h)
    return h


if __name__ == "__main__":
    B, S, d_model, d_ff, num_dense = 2, 8, 32, 64, 3
    slope = 0.1

    key = jax.random.PRNGKey(0)
    key, kx = jax.random.split(key)
    x = jax.random.normal(kx, (B, S, d_model), jnp.float32)

    params = init_ffn_params(key, d_model, num_dense, d_ff)
    ref = _reference(x, params, slope)

    # Exact x.float() semantics (f32 MXU inputs) — tight tolerance.
    out_f32 = jax.block_until_ready(
        positionwise_feed_forward(x, params, slope, compute_dtype=jnp.float32))
    assert out_f32.shape == (B, S, d_model)
    assert jnp.allclose(out_f32, ref, atol=2e-5, rtol=2e-5)

    # Default fast path: bf16 MXU inputs, f32 accumulate — looser tolerance.
    out_bf16 = jax.block_until_ready(positionwise_feed_forward(x, params, slope))
    assert out_bf16.shape == (B, S, d_model)
    assert jnp.allclose(out_bf16, ref, atol=1e-1, rtol=1e-1)

    # num_dense == 1 path (f32, exact).
    params1 = init_ffn_params(key, d_model, 1, d_ff)
    out1 = jax.block_until_ready(
        positionwise_feed_forward(x, params1, slope, compute_dtype=jnp.float32))
    ref1 = _reference(x, params1, slope)
    assert out1.shape == (B, S, d_model)
    assert jnp.allclose(out1, ref1, atol=2e-5, rtol=2e-5)

    # num_dense == 0 path: identity.
    out0 = positionwise_feed_forward(x, [], slope)
    assert jnp.array_equal(out0, x)

    print("KERNEL_OK")
</pallas_src>

<mosaic_0001>
module attributes {stable_mosaic.version = 11 : i64} {
  func.func @_ffn_kernel(%arg0: i32, %arg1: memref<16x128xf32, #tpu.memory_space<vmem>>, %arg2: memref<128x128xf32, #tpu.memory_space<vmem>>, %arg3: memref<128x128xf32, #tpu.memory_space<vmem>>, %arg4: memref<128x128xf32, #tpu.memory_space<vmem>>, %arg5: memref<1x128xf32, #tpu.memory_space<vmem>>, %arg6: memref<1x128xf32, #tpu.memory_space<vmem>>, %arg7: memref<1x128xf32, #tpu.memory_space<vmem>>, %arg8: memref<16x128xf32, #tpu.memory_space<vmem>>) attributes {dimension_semantics = [#tpu.dimension_semantics<parallel>], iteration_bounds = array<i64: 1>, scalar_prefetch = 0 : i64, scratch_operands = 0 : i64, tpu.core_type = #tpu.core_type<tc>, window_params = [{transform_indices = @transform_0, window_bounds = array<i64: 16, 128>}, {pipeline_mode = #tpu.pipeline_mode<synchronous>, transform_indices = @transform_1, window_bounds = array<i64: 128, 128>}, {pipeline_mode = #tpu.pipeline_mode<synchronous>, transform_indices = @transform_2, window_bounds = array<i64: 128, 128>}, {pipeline_mode = #tpu.pipeline_mode<synchronous>, transform_indices = @transform_3, window_bounds = array<i64: 128, 128>}, {pipeline_mode = #tpu.pipeline_mode<synchronous>, transform_indices = @transform_4, window_bounds = array<i64: 1, 128>}, {pipeline_mode = #tpu.pipeline_mode<synchronous>, transform_indices = @transform_5, window_bounds = array<i64: 1, 128>}, {pipeline_mode = #tpu.pipeline_mode<synchronous>, transform_indices = @transform_6, window_bounds = array<i64: 1, 128>}, {transform_indices = @transform_7, window_bounds = array<i64: 16, 128>}]} {
    %c0 = arith.constant 0 : index
    %c0_0 = arith.constant 0 : index
    %0 = vector.load %arg1[%c0, %c0_0] : memref<16x128xf32, #tpu.memory_space<vmem>>, vector<16x128xf32>
    %c0_1 = arith.constant 0 : index
    %c0_2 = arith.constant 0 : index
    %1 = vector.load %arg2[%c0_1, %c0_2] : memref<128x128xf32, #tpu.memory_space<vmem>>, vector<128x128xf32>
    %cst = arith.constant dense<0.000000e+00> : vector<16x128xf32>
    %2 = tpu.matmul %0, %1, %cst {dimension_numbers = #tpu.dot_dimension_numbers<[1], [0], [0], [1], [0, 0, 1, 1], [], []>} : vector<16x128xf32>, vector<128x128xf32>, vector<16x128xf32> -> vector<16x128xf32>
    %c0_3 = arith.constant 0 : index
    %c0_4 = arith.constant 0 : index
    %3 = vector.load %arg5[%c0_3, %c0_4] : memref<1x128xf32, #tpu.memory_space<vmem>>, vector<1x128xf32>
    %4 = vector.broadcast %3 : vector<1x128xf32> to vector<16x128xf32>
    %5 = arith.addf %2, %4 : vector<16x128xf32>
    %cst_5 = arith.constant 0.000000e+00 : f32
    %6 = vector.broadcast %cst_5 : f32 to vector<16x128xf32>
    %7 = arith.cmpf oge, %5, %6 : vector<16x128xf32>
    %cst_6 = arith.constant 1.000000e-01 : f32
    %8 = vector.broadcast %cst_6 : f32 to vector<16x128xf32>
    %9 = arith.mulf %8, %5 : vector<16x128xf32>
    %10 = arith.select %7, %5, %9 : vector<16x128xi1>, vector<16x128xf32>
    %c0_7 = arith.constant 0 : index
    %c0_8 = arith.constant 0 : index
    %11 = vector.load %arg3[%c0_7, %c0_8] : memref<128x128xf32, #tpu.memory_space<vmem>>, vector<128x128xf32>
    %cst_9 = arith.constant dense<0.000000e+00> : vector<16x128xf32>
    %12 = tpu.matmul %10, %11, %cst_9 {dimension_numbers = #tpu.dot_dimension_numbers<[1], [0], [0], [1], [0, 0, 1, 1], [], []>} : vector<16x128xf32>, vector<128x128xf32>, vector<16x128xf32> -> vector<16x128xf32>
    %c0_10 = arith.constant 0 : index
    %c0_11 = arith.constant 0 : index
    %13 = vector.load %arg6[%c0_10, %c0_11] : memref<1x128xf32, #tpu.memory_space<vmem>>, vector<1x128xf32>
    %14 = vector.broadcast %13 : vector<1x128xf32> to vector<16x128xf32>
    %15 = arith.addf %12, %14 : vector<16x128xf32>
    %cst_12 = arith.constant 0.000000e+00 : f32
    %16 = vector.broadcast %cst_12 : f32 to vector<16x128xf32>
    %17 = arith.cmpf oge, %15, %16 : vector<16x128xf32>
    %cst_13 = arith.constant 1.000000e-01 : f32
    %18 = vector.broadcast %cst_13 : f32 to vector<16x128xf32>
    %19 = arith.mulf %18, %15 : vector<16x128xf32>
    %20 = arith.select %17, %15, %19 : vector<16x128xi1>, vector<16x128xf32>
    %c0_14 = arith.constant 0 : index
    %c0_15 = arith.constant 0 : index
    %21 = vector.load %arg4[%c0_14, %c0_15] : memref<128x128xf32, #tpu.memory_space<vmem>>, vector<128x128xf32>
    %cst_16 = arith.constant dense<0.000000e+00> : vector<16x128xf32>
    %22 = tpu.matmul %20, %21, %cst_16 {dimension_numbers = #tpu.dot_dimension_numbers<[1], [0], [0], [1], [0, 0, 1, 1], [], []>} : vector<16x128xf32>, vector<128x128xf32>, vector<16x128xf32> -> vector<16x128xf32>
    %c0_17 = arith.constant 0 : index
    %c0_18 = arith.constant 0 : index
    %23 = vector.load %arg7[%c0_17, %c0_18] : memref<1x128xf32, #tpu.memory_space<vmem>>, vector<1x128xf32>
    %24 = vector.broadcast %23 : vector<1x128xf32> to vector<16x128xf32>
    %25 = arith.addf %22, %24 : vector<16x128xf32>
    %cst_19 = arith.constant 0.000000e+00 : f32
    %26 = vector.broadcast %cst_19 : f32 to vector<16x128xf32>
    %27 = arith.cmpf oge, %25, %26 : vector<16x128xf32>
    %cst_20 = arith.constant 1.000000e-01 : f32
    %28 = vector.broadcast %cst_20 : f32 to vector<16x128xf32>
    %29 = arith.mulf %28, %25 : vector<16x128xf32>
    %30 = arith.select %27, %25, %29 : vector<16x128xi1>, vector<16x128xf32>
    %c0_21 = arith.constant 0 : index
    %c0_22 = arith.constant 0 : index
    %31 = vector.load %arg8[%c0_21, %c0_22] : memref<16x128xf32, #tpu.memory_space<vmem>>, vector<16x128xf32>
    tpu.vector_store %arg8[%c0_21, %c0_22], %30 {strides = array<i32>} : memref<16x128xf32, #tpu.memory_space<vmem>>, vector<16x128xf32>,
    return
  }
  func.func @transform_0(%arg0: i32) -> (i32, i32) {
    %c0_i32 = arith.constant 0 : i32
    %c0_i32_0 = arith.constant 0 : i32
    return %arg0, %c0_i32 : i32, i32
  }
  func.func @transform_1(%arg0: i32) -> (i32, i32) {
    %c0_i32 = arith.constant 0 : i32
    %c0_i32_0 = arith.constant 0 : i32
    %c0_i32_1 = arith.constant 0 : i32
    return %c0_i32, %c0_i32_0 : i32, i32
  }
  func.func @transform_2(%arg0: i32) -> (i32, i32) {
    %c0_i32 = arith.constant 0 : i32
    %c0_i32_0 = arith.constant 0 : i32
    %c0_i32_1 = arith.constant 0 : i32
    return %c0_i32, %c0_i32_0 : i32, i32
  }
  func.func @transform_3(%arg0: i32) -> (i32, i32) {
    %c0_i32 = arith.constant 0 : i32
    %c0_i32_0 = arith.constant 0 : i32
    %c0_i32_1 = arith.constant 0 : i32
    return %c0_i32, %c0_i32_0 : i32, i32
  }
  func.func @transform_4(%arg0: i32) -> (i32, i32) {
    %c0_i32 = arith.constant 0 : i32
    %c0_i32_0 = arith.constant 0 : i32
    %c0_i32_1 = arith.constant 0 : i32
    return %c0_i32, %c0_i32_0 : i32, i32
  }
  func.func @transform_5(%arg0: i32) -> (i32, i32) {
    %c0_i32 = arith.constant 0 : i32
    %c0_i32_0 = arith.constant 0 : i32
    %c0_i32_1 = arith.constant 0 : i32
    return %c0_i32, %c0_i32_0 : i32, i32
  }
  func.func @transform_6(%arg0: i32) -> (i32, i32) {
    %c0_i32 = arith.constant 0 : i32
    %c0_i32_0 = arith.constant 0 : i32
    %c0_i32_1 = arith.constant 0 : i32
    return %c0_i32, %c0_i32_0 : i32, i32
  }
  func.func @transform_7(%arg0: i32) -> (i32, i32) {
    %c0_i32 = arith.constant 0 : i32
    %c0_i32_0 = arith.constant 0 : i32
    return %arg0, %c0_i32 : i32, i32
  }
}

</mosaic_0001>

<llo_original>
// kernel: tpu_custom_call.1
$region0: #{tpu_custom_call.1}
  #allocation0 [shape = 'u32[]', space=smem, size = 0x4, offset = 0x4, fixed_abs, tag = 'smem constant byte address 0x4 - core index']
  #allocation1 [shape = 'u32[72,128]{1,0:T(1,128)}', space=vmem, size = 0x9000, scoped, tag = 'internal scratch']
  %s0 = inlined_call_operand.hbm [shape: f32[16,128], index: 0, kind: input, shape index: {}]
  %s1 = inlined_call_operand.hbm [shape: f32[128,128], index: 1, kind: input, shape index: {}]
  %s2 = inlined_call_operand.hbm [shape: f32[128,128], index: 2, kind: input, shape index: {}]
  %s3 = inlined_call_operand.hbm [shape: f32[128,128], index: 3, kind: input, shape index: {}]
  %s4 = inlined_call_operand.vmem [shape: f32[1,128], index: 4, kind: input, shape index: {}]
  %s5 = inlined_call_operand.vmem [shape: f32[1,128], index: 5, kind: input, shape index: {}]
  %s6 = inlined_call_operand.vmem [shape: f32[1,128], index: 6, kind: input, shape index: {}]
  %s7 = inlined_call_operand.hbm [shape: f32[16,128], index: 7, kind: output, shape index: {}]
  %s8 = sld [smem:[#allocation0]]
  $region54: #{tpu_custom_call.1} parent=0
    _
  %s10 = ssub.s32 1, %s8
  %s11 = scalar_select 0, %s10, %s8
  $region1: #{tpu_custom_call.1} parent=0
    #allocation2 [shape = 'u8[8192]{0}', space=vmem, size = 0x2000, scoped, tag = 'input window, operand 0, single buffered']
    #allocation3 [shape = 's32[1]{0}', space=sflag, size = 0x4, scoped, tag = 'scoped memory for tpu_custom_call.1']
    #allocation4 [shape = 's32[1]{0}', space=sflag, size = 0x4, scoped, tag = 'scoped memory for tpu_custom_call.1']
    #allocation5 [shape = 'u8[65536]{0}', space=vmem, size = 0x10000, scoped, tag = 'input window, operand 1, single buffered']
    #allocation6 [shape = 's32[1]{0}', space=sflag, size = 0x4, scoped, tag = 'scoped memory for tpu_custom_call.1']
    #allocation7 [shape = 'u8[65536]{0}', space=vmem, size = 0x10000, scoped, tag = 'input window, operand 2, single buffered']
    #allocation8 [shape = 'u8[65536]{0}', space=vmem, size = 0x10000, scoped, tag = 'input window, operand 3, single buffered']
    #allocation9 [shape = 's32[1]{0}', space=sflag, size = 0x4, scoped, tag = 'scoped memory for tpu_custom_call.1']
    #allocation10 [shape = 'u8[8192]{0}', space=vmem, size = 0x2000, scoped, tag = 'output window, operand 0, single buffered']
    %12 = vsyncpa [#allocation3], 0
    %13 = vsyncpa [#allocation6], 0
    %14 = vsyncpa [#allocation9], 0
    %15 = vsyncpa [#allocation4], 0
    // Predicated region
    $region2: #{tpu_custom_call.1} parent=1 // pred_check
      _
    $region3: #{tpu_custom_call.1} parent=1 // pred_check_branch
      %17 = sbr.rel (0) target = $region5
    $region4: #{tpu_custom_call.1} parent=1 // pred_region
      %19 = vsyncadd [#allocation3], 0
      %s20 = sshll.u32 %s0, 4
      %s21 = int_to_ptr.hbm [resolvable:$true] %s20
      %s22 = sshll.u32 [#allocation2], 4
      %s23 = int_to_ptr.vmem [resolvable:$true] %s22
      %28 = dma.hbm_to_vmem [thread:$0]  %s21, 256, %s23, [#allocation3], 128, 128, 8
    $region5: #{tpu_custom_call.1} parent=1 // pred_fallthru
      _
    // Predicated region
    $region6: #{tpu_custom_call.1} parent=1 // pred_check
      _
    $region7: #{tpu_custom_call.1} parent=1 // pred_check_branch
      %30 = sbr.rel (0) target = $region9
    $region8: #{tpu_custom_call.1} parent=1 // pred_region
      %32 = vsyncadd [#allocation6], 0
      %s33 = sshll.u32 %s1, 4
      %s34 = int_to_ptr.hbm [resolvable:$true] %s33
      %s35 = sshll.u32 [#allocation5], 4
      %s36 = int_to_ptr.vmem [resolvable:$true] %s35
      %41 = dma.hbm_to_vmem [thread:$0]  %s34, 2048, %s36, [#allocation6], 128, 128, 8
    $region9: #{tpu_custom_call.1} parent=1 // pred_fallthru
      _
    // Predicated region
    $region10: #{tpu_custom_call.1} parent=1 // pred_check
      _
    $region11: #{tpu_custom_call.1} parent=1 // pred_check_branch
      %43 = sbr.rel (0) target = $region13
    $region12: #{tpu_custom_call.1} parent=1 // pred_region
      %45 = vsyncadd [#allocation6], 0
      %s46 = sshll.u32 %s2, 4
      %s47 = int_to_ptr.hbm [resolvable:$true] %s46
      %s48 = sshll.u32 [#allocation7], 4
      %s49 = int_to_ptr.vmem [resolvable:$true] %s48
      %54 = dma.hbm_to_vmem [thread:$0]  %s47, 2048, %s49, [#allocation6], 128, 128, 8
    $region13: #{tpu_custom_call.1} parent=1 // pred_fallthru
      _
    // Predicated region
    $region14: #{tpu_custom_call.1} parent=1 // pred_check
      _
    $region15: #{tpu_custom_call.1} parent=1 // pred_check_branch
      %56 = sbr.rel (0) target = $region17
    $region16: #{tpu_custom_call.1} parent=1 // pred_region
      %58 = vsyncadd [#allocation9], 0
      %s59 = sshll.u32 %s3, 4
      %s60 = int_to_ptr.hbm [resolvable:$true] %s59
      %s61 = sshll.u32 [#allocation8], 4
      %s62 = int_to_ptr.vmem [resolvable:$true] %s61
      %67 = dma.hbm_to_vmem [thread:$0]  %s60, 2048, %s62, [#allocation9], 128, 128, 8
    $region17: #{tpu_custom_call.1} parent=1 // pred_fallthru
      _
    // Predicated region
    $region18: #{tpu_custom_call.1} parent=1 // pred_check
      _
    $region19: #{tpu_custom_call.1} parent=1 // pred_check_branch
      %69 = sbr.rel (0) target = $region21
    $region20: #{tpu_custom_call.1} parent=1 // pred_region
      _
    $region21: #{tpu_custom_call.1} parent=1 // pred_fallthru
      _
    // Predicated region
    $region22: #{tpu_custom_call.1} parent=1 // pred_check
      _
    $region23: #{tpu_custom_call.1} parent=1 // pred_check_branch
      %71 = sbr.rel (0) target = $region25
    $region24: #{tpu_custom_call.1} parent=1 // pred_region
      _
    $region25: #{tpu_custom_call.1} parent=1 // pred_fallthru
      _
    // Predicated region
    $region26: #{tpu_custom_call.1} parent=1 // pred_check
      _
    $region27: #{tpu_custom_call.1} parent=1 // pred_check_branch
      %73 = sbr.rel (0) target = $region29
    $region28: #{tpu_custom_call.1} parent=1 // pred_region
      _
    $region29: #{tpu_custom_call.1} parent=1 // pred_fallthru
      _
    // Predicated region
    $region30: #{tpu_custom_call.1} parent=1 // pred_check
      _
    $region31: #{tpu_custom_call.1} parent=1 // pred_check_branch
      %75 = sbr.rel (0) target = $region33
    $region32: #{tpu_custom_call.1} parent=1 // pred_region
      %77 = dma.done [#allocation3], 256
    $region33: #{tpu_custom_call.1} parent=1 // pred_fallthru
      _
    // Predicated region
    $region34: #{tpu_custom_call.1} parent=1 // pred_check
      _
    $region35: #{tpu_custom_call.1} parent=1 // pred_check_branch
      %79 = sbr.rel (0) target = $region37
    $region36: #{tpu_custom_call.1} parent=1 // pred_region
      %81 = dma.done [#allocation6], 2048
    $region37: #{tpu_custom_call.1} parent=1 // pred_fallthru
      _
    // Predicated region
    $region38: #{tpu_custom_call.1} parent=1 // pred_check
      _
    $region39: #{tpu_custom_call.1} parent=1 // pred_check_branch
      %83 = sbr.rel (0) target = $region41
    $region40: #{tpu_custom_call.1} parent=1 // pred_region
      %85 = dma.done [#allocation6], 2048
    $region41: #{tpu_custom_call.1} parent=1 // pred_fallthru
      _
    // Predicated region
    $region42: #{tpu_custom_call.1} parent=1 // pred_check
      _
    $region43: #{tpu_custom_call.1} parent=1 // pred_check_branch
      %87 = sbr.rel (0) target = $region45
    $region44: #{tpu_custom_call.1} parent=1 // pred_region
      %89 = dma.done [#allocation9], 2048
    $region45: #{tpu_custom_call.1} parent=1 // pred_fallthru
      _
    %v90 = vld [vmem:[#allocation2] sm:$0xff]
    %v91 = vld [vmem:[#allocation2 + $0x8] sm:$0xff]
    %v92 = vld [vmem:[#allocation5] sm:$0xff]
    %v93 = vld [vmem:[#allocation5 + $0x8] sm:$0xff]
    %v94 = vld [vmem:[#allocation5 + $0x10] sm:$0xff]
    %v95 = vld [vmem:[#allocation5 + $0x18] sm:$0xff]
    %v96 = vld [vmem:[#allocation5 + $0x20] sm:$0xff]
    %v97 = vld [vmem:[#allocation5 + $0x28] sm:$0xff]
    %v98 = vld [vmem:[#allocation5 + $0x30] sm:$0xff]
    %v99 = vld [vmem:[#allocation5 + $0x38] sm:$0xff]
    %v100 = vld [vmem:[#allocation5 + $0x40] sm:$0xff]
    %v101 = vld [vmem:[#allocation5 + $0x48] sm:$0xff]
    %v102 = vld [vmem:[#allocation5 + $0x50] sm:$0xff]
    %v103 = vld [vmem:[#allocation5 + $0x58] sm:$0xff]
    %v104 = vld [vmem:[#allocation5 + $0x60] sm:$0xff]
    %v105 = vld [vmem:[#allocation5 + $0x68] sm:$0xff]
    %v106 = vld [vmem:[#allocation5 + $0x70] sm:$0xff]
    %v107 = vld [vmem:[#allocation5 + $0x78] sm:$0xff]
    %v108 = vld [vmem:[%s4] sm:$0x1]
    %v110 = vperm.slane %v108, 0
    %112 = vmatpush.msra.mxu0 %v107
    %113 = vmatpush.msra.mxu0 %v106
    %114 = vmatpush.msra.mxu0 %v105
    %115 = vmatpush.msra.mxu0 %v104
    %116 = vmatpush.msra.mxu0 %v103
    %117 = vmatpush.msra.mxu0 %v102
    %118 = vmatpush.msra.mxu0 %v101
    %119 = vmatpush.msra.mxu0 %v100
    %120 = vmatpush.msra.mxu0 %v99
    %121 = vmatpush.msra.mxu0 %v98
    %122 = vmatpush.msra.mxu0 %v97
    %123 = vmatpush.msra.mxu0 %v96
    %124 = vmatpush.msra.mxu0 %v95
    %125 = vmatpush.msra.mxu0 %v94
    %126 = vmatpush.msra.mxu0 %v93
    %127 = vmatpush.msra.mxu0 %v92
    %128 = vmatmul.f32.gmra.mxu0 %v90
    %v129 = vpop.f32.mrf.mxu0
    %v130 = vadd.f32 %v110, %v129
    %131 = vmatmul.f32.gmra.mxu0 %v91
    %v132 = vpop.f32.mrf.mxu0
    %v133 = vadd.f32 %v110, %v132
    %134 = vdwg.mxu0
    %vm135 = vcmp.ge.f32.partialorder %v130, 0.0
    %vm136 = vcmp.ge.f32.partialorder %v133, 0.0
    %v137 = vmul.f32 %v130, 0.1
    %v138 = vmul.f32 %v133, 0.1
    %v139 = vsel %vm135, %v130, %v137
    %v140 = vsel %vm136, %v133, %v138
    %v141 = vld [vmem:[#allocation7] sm:$0xff]
    %v142 = vld [vmem:[#allocation7 + $0x8] sm:$0xff]
    %v143 = vld [vmem:[#allocation7 + $0x10] sm:$0xff]
    %v144 = vld [vmem:[#allocation7 + $0x18] sm:$0xff]
    %v145 = vld [vmem:[#allocation7 + $0x20] sm:$0xff]
    %v146 = vld [vmem:[#allocation7 + $0x28] sm:$0xff]
    %v147 = vld [vmem:[#allocation7 + $0x30] sm:$0xff]
    %v148 = vld [vmem:[#allocation7 + $0x38] sm:$0xff]
    %v149 = vld [vmem:[#allocation7 + $0x40] sm:$0xff]
    %v150 = vld [vmem:[#allocation7 + $0x48] sm:$0xff]
    %v151 = vld [vmem:[#allocation7 + $0x50] sm:$0xff]
    %v152 = vld [vmem:[#allocation7 + $0x58] sm:$0xff]
    %v153 = vld [vmem:[#allocation7 + $0x60] sm:$0xff]
    %v154 = vld [vmem:[#allocation7 + $0x68] sm:$0xff]
    %v155 = vld [vmem:[#allocation7 + $0x70] sm:$0xff]
    %v156 = vld [vmem:[#allocation7 + $0x78] sm:$0xff]
    %v157 = vld [vmem:[%s5] sm:$0x1]
    %v159 = vperm.slane %v157, 0
    %161 = vmatpush.msra.mxu0 %v156
    %162 = vmatpush.msra.mxu0 %v155
    %163 = vmatpush.msra.mxu0 %v154
    %164 = vmatpush.msra.mxu0 %v153
    %165 = vmatpush.msra.mxu0 %v152
    %166 = vmatpush.msra.mxu0 %v151
    %167 = vmatpush.msra.mxu0 %v150
    %168 = vmatpush.msra.mxu0 %v149
    %169 = vmatpush.msra.mxu0 %v148
    %170 = vmatpush.msra.mxu0 %v147
    %171 = vmatpush.msra.mxu0 %v146
    %172 = vmatpush.msra.mxu0 %v145
    %173 = vmatpush.msra.mxu0 %v144
    %174 = vmatpush.msra.mxu0 %v143
    %175 = vmatpush.msra.mxu0 %v142
    %176 = vmatpush.msra.mxu0 %v141
    %177 = vmatmul.f32.gmra.mxu0 %v139
    %v178 = vpop.f32.mrf.mxu0
    %v179 = vadd.f32 %v159, %v178
    %180 = vmatmul.f32.gmra.mxu0 %v140
    %v181 = vpop.f32.mrf.mxu0
    %v182 = vadd.f32 %v159, %v181
    %183 = vdwg.mxu0
    %vm184 = vcmp.ge.f32.partialorder %v179, 0.0
    %vm185 = vcmp.ge.f32.partialorder %v182, 0.0
    %v186 = vmul.f32 %v179, 0.1
    %v187 = vmul.f32 %v182, 0.1
    %v188 = vsel %vm184, %v179, %v186
    %v189 = vsel %vm185, %v182, %v187
    %v190 = vld [vmem:[#allocation8] sm:$0xff]
    %v191 = vld [vmem:[#allocation8 + $0x8] sm:$0xff]
    %v192 = vld [vmem:[#allocation8 + $0x10] sm:$0xff]
    %v193 = vld [vmem:[#allocation8 + $0x18] sm:$0xff]
    %v194 = vld [vmem:[#allocation8 + $0x20] sm:$0xff]
    %v195 = vld [vmem:[#allocation8 + $0x28] sm:$0xff]
    %v196 = vld [vmem:[#allocation8 + $0x30] sm:$0xff]
    %v197 = vld [vmem:[#allocation8 + $0x38] sm:$0xff]
    %v198 = vld [vmem:[#allocation8 + $0x40] sm:$0xff]
    %v199 = vld [vmem:[#allocation8 + $0x48] sm:$0xff]
    %v200 = vld [vmem:[#allocation8 + $0x50] sm:$0xff]
    %v201 = vld [vmem:[#allocation8 + $0x58] sm:$0xff]
    %v202 = vld [vmem:[#allocation8 + $0x60] sm:$0xff]
    %v203 = vld [vmem:[#allocation8 + $0x68] sm:$0xff]
    %v204 = vld [vmem:[#allocation8 + $0x70] sm:$0xff]
    %v205 = vld [vmem:[#allocation8 + $0x78] sm:$0xff]
    %v206 = vld [vmem:[%s6] sm:$0x1]
    %v208 = vperm.slane %v206, 0
    %210 = vmatpush.msra.mxu0 %v205
    %211 = vmatpush.msra.mxu0 %v204
    %212 = vmatpush.msra.mxu0 %v203
    %213 = vmatpush.msra.mxu0 %v202
    %214 = vmatpush.msra.mxu0 %v201
    %215 = vmatpush.msra.mxu0 %v200
    %216 = vmatpush.msra.mxu0 %v199
    %217 = vmatpush.msra.mxu0 %v198
    %218 = vmatpush.msra.mxu0 %v197
    %219 = vmatpush.msra.mxu0 %v196
    %220 = vmatpush.msra.mxu0 %v195
    %221 = vmatpush.msra.mxu0 %v194
    %222 = vmatpush.msra.mxu0 %v193
    %223 = vmatpush.msra.mxu0 %v192
    %224 = vmatpush.msra.mxu0 %v191
    %225 = vmatpush.msra.mxu0 %v190
    %226 = vmatmul.f32.gmra.mxu0 %v188
    %v227 = vpop.f32.mrf.mxu0
    %v228 = vadd.f32 %v208, %v227
    %229 = vmatmul.f32.gmra.mxu0 %v189
    %v230 = vpop.f32.mrf.mxu0
    %v231 = vadd.f32 %v208, %v230
    %232 = vdwg.mxu0
    %vm233 = vcmp.ge.f32.partialorder %v228, 0.0
    %vm234 = vcmp.ge.f32.partialorder %v231, 0.0
    %v235 = vmul.f32 %v228, 0.1
    %v236 = vmul.f32 %v231, 0.1
    %v237 = vsel %vm233, %v228, %v235
    %v238 = vsel %vm234, %v231, %v236
    %239 = vst [vmem:[#allocation10] sm:$0xff] %v237
    %240 = vst [vmem:[#allocation10 + $0x8] sm:$0xff] %v238
    // Predicated region
    $region46: #{tpu_custom_call.1} parent=1 // pred_check
      _
    $region47: #{tpu_custom_call.1} parent=1 // pred_check_branch
      %242 = sbr.rel (0) target = $region49
    $region48: #{tpu_custom_call.1} parent=1 // pred_region
      %244 = vsyncadd [#allocation4], 0
      %s245 = sshll.u32 [#allocation10], 4
      %s246 = int_to_ptr.vmem [resolvable:$true] %s245
      %s247 = sshll.u32 %s7, 4
      %s248 = int_to_ptr.hbm [resolvable:$true] %s247
      %253 = dma.vmem_to_hbm [thread:$0]  %s246, 256, %s248, [#allocation4], 128, 128, 8
    $region49: #{tpu_custom_call.1} parent=1 // pred_fallthru
      _
    // Predicated region
    $region50: #{tpu_custom_call.1} parent=1 // pred_check
      _
    $region51: #{tpu_custom_call.1} parent=1 // pred_check_branch
      %255 = sbr.rel (0) target = $region53
    $region52: #{tpu_custom_call.1} parent=1 // pred_region
      %257 = dma.done [#allocation4], 256
    $region53: #{tpu_custom_call.1} parent=1 // pred_fallthru
      _
    %258 = vsyncpa [#allocation3], 1
    %259 = vsyncpa [#allocation6], 1
    %260 = vsyncpa [#allocation9], 1
    %261 = vsyncpa [#allocation4], 1

</llo_original>
